<compile_context>
chip_gen: v6e
topology: v6e:2x2x1
jax: 0.10.0
libtpu: 0.0.40
codegen_flags: <defaults>
</compile_context>

<pallas_src>
import jax
import jax.numpy as jnp
from jax.experimental import pallas as pl
from jax.experimental.pallas import tpu as pltpu


LANE = 128      # padded lane width for hidden layers
IN_DIM = 32
OUT_DIM = 5
OUT_PAD = 8     # fc4 output padded to one sublane group (transposed-output rows)


def mlp_kernel(x_ref, w1_ref, b1_ref, w2_ref, b2_ref, w3_ref, b3_ref,
               w4_ref, b4_ref, o_ref):
    # fc1 + relu (bf16 MXU matmul, f32 accumulate / bias / relu on the VPU)
    x = x_ref[...].astype(jnp.bfloat16)          # cast in-kernel (no extra wrapper pass)
    h = jnp.dot(x, w1_ref[...], preferred_element_type=jnp.float32)
    h = jnp.maximum(h + b1_ref[...], 0.0)
    # dropout1: identity in eval mode
    # fc2 + relu
    h = jnp.dot(h.astype(jnp.bfloat16), w2_ref[...],
                preferred_element_type=jnp.float32)
    h = jnp.maximum(h + b2_ref[...], 0.0)
    # dropout2: identity in eval mode
    # fc3 + relu
    h = jnp.dot(h.astype(jnp.bfloat16), w3_ref[...],
                preferred_element_type=jnp.float32)
    h = jnp.maximum(h + b3_ref[...], 0.0)
    # fc4, transposed: (8, 128) contracted with (tile_b, 128) on the 128-lane axis
    # -> (8, tile_b): lane-dense output block, ~16x fewer HBM write bytes.
    o = jax.lax.dot_general(
        w4_ref[...], h.astype(jnp.bfloat16),
        dimension_numbers=(((1,), (1,)), ((), ())),
        preferred_element_type=jnp.float32)
    o_ref[...] = (o + b4_ref[...]).astype(o_ref.dtype)   # b4 is (8, 1): lane-broadcast add


def _choose_tile_b(batch: int) -> int:
    """Adaptive batch tile.

    Small batches: one exact (8-aligned) tile, so a batch of 8 isn't padded 32x.
    Larger batches: 128-multiple tiles (lane-dense transposed output), capped at 1024
    rows, targeting >= 2 grid steps so the 'parallel' axis can shard across v7x's
    two TensorCores."""
    b8 = -(-batch // 8) * 8
    if b8 <= 256:
        return b8
    b128 = -(-batch // 128) * 128
    return max(128, min(1024, (b128 // 2) // 128 * 128))


@jax.jit
def ecg_classifier_forward(x, packed):
    """x: (B, 32) float32. packed: lane-padded bf16 weights / f32 biases (pack_params)."""
    B = x.shape[0]
    tile_b = _choose_tile_b(B)
    num_tiles = -(-B // tile_b)
    b_pad = num_tiles * tile_b

    def resident(shape):
        # Constant index_map -> same block every grid step: stays in VMEM, no re-DMA.
        return pl.BlockSpec(shape, lambda i: (0, 0))

    out = pl.pallas_call(
        mlp_kernel,
        out_shape=jax.ShapeDtypeStruct((OUT_PAD, b_pad), jnp.float32),
        grid=(num_tiles,),
        in_specs=[
            pl.BlockSpec((tile_b, IN_DIM), lambda i: (i, 0)),    # x tile (ragged tail OK)
            resident((IN_DIM, LANE)),  resident((1, LANE)),      # w1, b1
            resident((LANE, LANE)),    resident((1, LANE)),      # w2, b2
            resident((LANE, LANE)),    resident((1, LANE)),      # w3, b3
            resident((OUT_PAD, LANE)), resident((OUT_PAD, 1)),   # w4 (transposed), b4
        ],
        out_specs=pl.BlockSpec((OUT_PAD, tile_b), lambda i: (0, i)),
        compiler_params=pltpu.CompilerParams(
            dimension_semantics=("parallel",),
            vmem_limit_bytes=32 * 1024 * 1024,
        ),
    )(x,
      packed["w1"], packed["b1"],
      packed["w2"], packed["b2"],
      packed["w3"], packed["b3"],
      packed["w4"], packed["b4"])
    # (8, b_pad) -> (B, 5): tiny transpose + slice in the wrapper.
    return out[:OUT_DIM, :B].T


def init_params(key):
    """Raw f32 params mimicking nn.Linear default init (uniform +-1/sqrt(fan_in)).
    Weights stored as (in_dim, out_dim) so the math is x @ W + b."""
    dims = [(32, 128), (128, 64), (64, 32), (32, 5)]
    params = {}
    for i, (fan_in, fan_out) in enumerate(dims, start=1):
        key, kw, kb = jax.random.split(key, 3)
        bound = 1.0 / jnp.sqrt(fan_in)
        params[f"w{i}"] = jax.random.uniform(
            kw, (fan_in, fan_out), jnp.float32, minval=-bound, maxval=bound)
        params[f"b{i}"] = jax.random.uniform(
            kb, (1, fan_out), jnp.float32, minval=-bound, maxval=bound)
    return params


def pack_params(raw):
    """Zero-pad hidden layers to (in_pad, 128); fc4 is packed TRANSPOSED to (8, 128).
    Zero padding is exact: padded bias entries are 0, ReLU(0)=0, and padded weight
    rows/cols are 0, so padded lanes never contaminate real outputs."""
    packed = {}
    in_pads = {1: IN_DIM, 2: LANE, 3: LANE}
    for i in (1, 2, 3):
        w, b = raw[f"w{i}"], raw[f"b{i}"]
        in_d, out_d = w.shape
        wp = jnp.zeros((in_pads[i], LANE), jnp.float32).at[:in_d, :out_d].set(w)
        bp = jnp.zeros((1, LANE), jnp.float32).at[:, :out_d].set(b)
        packed[f"w{i}"] = wp.astype(jnp.bfloat16)
        packed[f"b{i}"] = bp                      # bias + ReLU stay in f32 on the VPU
    # fc4: (32, 5) -> transposed + padded (8, 128) bf16; bias (1, 5) -> (8, 1) f32.
    w4, b4 = raw["w4"], raw["b4"]
    w4t = jnp.zeros((OUT_PAD, LANE), jnp.float32).at[:w4.shape[1], :w4.shape[0]].set(w4.T)
    b4t = jnp.zeros((OUT_PAD, 1), jnp.float32).at[:b4.shape[1], 0].set(b4[0])
    packed["w4"] = w4t.astype(jnp.bfloat16)
    packed["b4"] = b4t
    return packed


def ref_forward(x, raw):
    """Pure-JAX reference matching the kernel's math (bf16 matmuls, f32 accumulate)."""
    def lin(h, w, b):
        return jnp.dot(h.astype(jnp.bfloat16), w.astype(jnp.bfloat16),
                       preferred_element_type=jnp.float32) + b
    h = jnp.maximum(lin(x, raw["w1"], raw["b1"]), 0.0)
    h = jnp.maximum(lin(h, raw["w2"], raw["b2"]), 0.0)
    h = jnp.maximum(lin(h, raw["w3"], raw["b3"]), 0.0)
    return lin(h, raw["w4"], raw["b4"])


if __name__ == "__main__":
    key = jax.random.PRNGKey(0)
    key, kx = jax.random.split(key)
    B = 8  # small example batch; tile selection keeps this a single exact tile
    x = jax.random.normal(kx, (B, IN_DIM), jnp.float32)

    raw = init_params(key)
    packed = pack_params(raw)

    out = ecg_classifier_forward(x, packed)
    out = jax.block_until_ready(out)

    ref = ref_forward(x, raw)
    assert out.shape == (B, OUT_DIM)
    assert jnp.allclose(out, ref, atol=1e-2, rtol=1e-2), (
        f"max abs err {jnp.max(jnp.abs(out - ref))}")

    print("KERNEL_OK")
</pallas_src>

<mosaic_0001>
module attributes {stable_mosaic.version = 11 : i64} {
  func.func @mlp_kernel(%arg0: i32, %arg1: memref<8x32xf32, #tpu.memory_space<vmem>>, %arg2: memref<32x128xbf16, #tpu.memory_space<vmem>>, %arg3: memref<1x128xf32, #tpu.memory_space<vmem>>, %arg4: memref<128x128xbf16, #tpu.memory_space<vmem>>, %arg5: memref<1x128xf32, #tpu.memory_space<vmem>>, %arg6: memref<128x128xbf16, #tpu.memory_space<vmem>>, %arg7: memref<1x128xf32, #tpu.memory_space<vmem>>, %arg8: memref<8x128xbf16, #tpu.memory_space<vmem>>, %arg9: memref<8x1xf32, #tpu.memory_space<vmem>>, %arg10: memref<8x8xf32, #tpu.memory_space<vmem>>) attributes {dimension_semantics = [#tpu.dimension_semantics<parallel>], iteration_bounds = array<i64: 1>, scalar_prefetch = 0 : i64, scratch_operands = 0 : i64, tpu.core_type = #tpu.core_type<tc>, window_params = [{transform_indices = @transform_0, window_bounds = array<i64: 8, 32>}, {pipeline_mode = #tpu.pipeline_mode<synchronous>, transform_indices = @transform_1, window_bounds = array<i64: 32, 128>}, {pipeline_mode = #tpu.pipeline_mode<synchronous>, transform_indices = @transform_2, window_bounds = array<i64: 1, 128>}, {pipeline_mode = #tpu.pipeline_mode<synchronous>, transform_indices = @transform_3, window_bounds = array<i64: 128, 128>}, {pipeline_mode = #tpu.pipeline_mode<synchronous>, transform_indices = @transform_4, window_bounds = array<i64: 1, 128>}, {pipeline_mode = #tpu.pipeline_mode<synchronous>, transform_indices = @transform_5, window_bounds = array<i64: 128, 128>}, {pipeline_mode = #tpu.pipeline_mode<synchronous>, transform_indices = @transform_6, window_bounds = array<i64: 1, 128>}, {pipeline_mode = #tpu.pipeline_mode<synchronous>, transform_indices = @transform_7, window_bounds = array<i64: 8, 128>}, {pipeline_mode = #tpu.pipeline_mode<synchronous>, transform_indices = @transform_8, window_bounds = array<i64: 8, 1>}, {transform_indices = @transform_9, window_bounds = array<i64: 8, 8>}]} {
    %c0 = arith.constant 0 : index
    %c0_0 = arith.constant 0 : index
    %0 = vector.load %arg1[%c0, %c0_0] : memref<8x32xf32, #tpu.memory_space<vmem>>, vector<8x32xf32>
    %1 = arith.truncf %0 : vector<8x32xf32> to vector<8x32xbf16>
    %c0_1 = arith.constant 0 : index
    %c0_2 = arith.constant 0 : index
    %2 = vector.load %arg2[%c0_1, %c0_2] : memref<32x128xbf16, #tpu.memory_space<vmem>>, vector<32x128xbf16>
    %cst = arith.constant dense<0.000000e+00> : vector<8x128xf32>
    %3 = tpu.matmul %1, %2, %cst {dimension_numbers = #tpu.dot_dimension_numbers<[1], [0], [0], [1], [0, 0, 1, 1], [], []>} : vector<8x32xbf16>, vector<32x128xbf16>, vector<8x128xf32> -> vector<8x128xf32>
    %c0_3 = arith.constant 0 : index
    %c0_4 = arith.constant 0 : index
    %4 = vector.load %arg3[%c0_3, %c0_4] : memref<1x128xf32, #tpu.memory_space<vmem>>, vector<1x128xf32>
    %5 = vector.broadcast %4 : vector<1x128xf32> to vector<8x128xf32>
    %6 = arith.addf %3, %5 : vector<8x128xf32>
    %cst_5 = arith.constant 0.000000e+00 : f32
    %7 = vector.broadcast %cst_5 : f32 to vector<8x128xf32>
    %8 = arith.maximumf %6, %7 : vector<8x128xf32>
    %9 = arith.truncf %8 : vector<8x128xf32> to vector<8x128xbf16>
    %c0_6 = arith.constant 0 : index
    %c0_7 = arith.constant 0 : index
    %10 = vector.load %arg4[%c0_6, %c0_7] : memref<128x128xbf16, #tpu.memory_space<vmem>>, vector<128x128xbf16>
    %cst_8 = arith.constant dense<0.000000e+00> : vector<8x128xf32>
    %11 = tpu.matmul %9, %10, %cst_8 {dimension_numbers = #tpu.dot_dimension_numbers<[1], [0], [0], [1], [0, 0, 1, 1], [], []>} : vector<8x128xbf16>, vector<128x128xbf16>, vector<8x128xf32> -> vector<8x128xf32>
    %c0_9 = arith.constant 0 : index
    %c0_10 = arith.constant 0 : index
    %12 = vector.load %arg5[%c0_9, %c0_10] : memref<1x128xf32, #tpu.memory_space<vmem>>, vector<1x128xf32>
    %13 = vector.broadcast %12 : vector<1x128xf32> to vector<8x128xf32>
    %14 = arith.addf %11, %13 : vector<8x128xf32>
    %cst_11 = arith.constant 0.000000e+00 : f32
    %15 = vector.broadcast %cst_11 : f32 to vector<8x128xf32>
    %16 = arith.maximumf %14, %15 : vector<8x128xf32>
    %17 = arith.truncf %16 : vector<8x128xf32> to vector<8x128xbf16>
    %c0_12 = arith.constant 0 : index
    %c0_13 = arith.constant 0 : index
    %18 = vector.load %arg6[%c0_12, %c0_13] : memref<128x128xbf16, #tpu.memory_space<vmem>>, vector<128x128xbf16>
    %cst_14 = arith.constant dense<0.000000e+00> : vector<8x128xf32>
    %19 = tpu.matmul %17, %18, %cst_14 {dimension_numbers = #tpu.dot_dimension_numbers<[1], [0], [0], [1], [0, 0, 1, 1], [], []>} : vector<8x128xbf16>, vector<128x128xbf16>, vector<8x128xf32> -> vector<8x128xf32>
    %c0_15 = arith.constant 0 : index
    %c0_16 = arith.constant 0 : index
    %20 = vector.load %arg7[%c0_15, %c0_16] : memref<1x128xf32, #tpu.memory_space<vmem>>, vector<1x128xf32>
    %21 = vector.broadcast %20 : vector<1x128xf32> to vector<8x128xf32>
    %22 = arith.addf %19, %21 : vector<8x128xf32>
    %cst_17 = arith.constant 0.000000e+00 : f32
    %23 = vector.broadcast %cst_17 : f32 to vector<8x128xf32>
    %24 = arith.maximumf %22, %23 : vector<8x128xf32>
    %c0_18 = arith.constant 0 : index
    %c0_19 = arith.constant 0 : index
    %25 = vector.load %arg8[%c0_18, %c0_19] : memref<8x128xbf16, #tpu.memory_space<vmem>>, vector<8x128xbf16>
    %26 = arith.truncf %24 : vector<8x128xf32> to vector<8x128xbf16>
    %cst_20 = arith.constant dense<0.000000e+00> : vector<8x8xf32>
    %27 = tpu.matmul %25, %26, %cst_20 {dimension_numbers = #tpu.dot_dimension_numbers<[1], [1], [0], [0], [0, 0, 1, 0], [], []>} : vector<8x128xbf16>, vector<8x128xbf16>, vector<8x8xf32> -> vector<8x8xf32>
    %c0_21 = arith.constant 0 : index
    %c0_22 = arith.constant 0 : index
    %28 = vector.load %arg9[%c0_21, %c0_22] : memref<8x1xf32, #tpu.memory_space<vmem>>, vector<8x1xf32>
    %29 = vector.broadcast %28 : vector<8x1xf32> to vector<8x8xf32>
    %30 = arith.addf %27, %29 : vector<8x8xf32>
    %c0_23 = arith.constant 0 : index
    %c0_24 = arith.constant 0 : index
    %31 = vector.load %arg10[%c0_23, %c0_24] : memref<8x8xf32, #tpu.memory_space<vmem>>, vector<8x8xf32>
    tpu.vector_store %arg10[%c0_23, %c0_24], %30 {strides = array<i32>} : memref<8x8xf32, #tpu.memory_space<vmem>>, vector<8x8xf32>,
    return
  }
  func.func @transform_0(%arg0: i32) -> (i32, i32) {
    %c0_i32 = arith.constant 0 : i32
    %c0_i32_0 = arith.constant 0 : i32
    return %arg0, %c0_i32 : i32, i32
  }
  func.func @transform_1(%arg0: i32) -> (i32, i32) {
    %c0_i32 = arith.constant 0 : i32
    %c0_i32_0 = arith.constant 0 : i32
    %c0_i32_1 = arith.constant 0 : i32
    return %c0_i32, %c0_i32_0 : i32, i32
  }
  func.func @transform_2(%arg0: i32) -> (i32, i32) {
    %c0_i32 = arith.constant 0 : i32
    %c0_i32_0 = arith.constant 0 : i32
    %c0_i32_1 = arith.constant 0 : i32
    return %c0_i32, %c0_i32_0 : i32, i32
  }
  func.func @transform_3(%arg0: i32) -> (i32, i32) {
    %c0_i32 = arith.constant 0 : i32
    %c0_i32_0 = arith.constant 0 : i32
    %c0_i32_1 = arith.constant 0 : i32
    return %c0_i32, %c0_i32_0 : i32, i32
  }
  func.func @transform_4(%arg0: i32) -> (i32, i32) {
    %c0_i32 = arith.constant 0 : i32
    %c0_i32_0 = arith.constant 0 : i32
    %c0_i32_1 = arith.constant 0 : i32
    return %c0_i32, %c0_i32_0 : i32, i32
  }
  func.func @transform_5(%arg0: i32) -> (i32, i32) {
    %c0_i32 = arith.constant 0 : i32
    %c0_i32_0 = arith.constant 0 : i32
    %c0_i32_1 = arith.constant 0 : i32
    return %c0_i32, %c0_i32_0 : i32, i32
  }
  func.func @transform_6(%arg0: i32) -> (i32, i32) {
    %c0_i32 = arith.constant 0 : i32
    %c0_i32_0 = arith.constant 0 : i32
    %c0_i32_1 = arith.constant 0 : i32
    return %c0_i32, %c0_i32_0 : i32, i32
  }
  func.func @transform_7(%arg0: i32) -> (i32, i32) {
    %c0_i32 = arith.constant 0 : i32
    %c0_i32_0 = arith.constant 0 : i32
    %c0_i32_1 = arith.constant 0 : i32
    return %c0_i32, %c0_i32_0 : i32, i32
  }
  func.func @transform_8(%arg0: i32) -> (i32, i32) {
    %c0_i32 = arith.constant 0 : i32
    %c0_i32_0 = arith.constant 0 : i32
    %c0_i32_1 = arith.constant 0 : i32
    return %c0_i32, %c0_i32_0 : i32, i32
  }
  func.func @transform_9(%arg0: i32) -> (i32, i32) {
    %c0_i32 = arith.constant 0 : i32
    %c0_i32_0 = arith.constant 0 : i32
    return %c0_i32, %arg0 : i32, i32
  }
}

</mosaic_0001>

<llo_original>
// kernel: ecg_classifier_forward.1
$region0: #{ecg_classifier_forward.1}
  #allocation0 [shape = 'u32[]', space=smem, size = 0x4, offset = 0x4, fixed_abs, tag = 'smem constant byte address 0x4 - core index']
  #allocation1 [shape = 'u32[144,128]{1,0:T(1,128)}', space=vmem, size = 0x12000, scoped, tag = 'internal scratch']
  %s0 = inlined_call_operand.hbm [shape: f32[8,32], index: 0, kind: input, shape index: {}]
  %s1 = inlined_call_operand.vmem [shape: bf16[32,128], index: 1, kind: input, shape index: {}]
  %s2 = inlined_call_operand.vmem [shape: f32[1,128], index: 2, kind: input, shape index: {}]
  %s3 = inlined_call_operand.hbm [shape: bf16[128,128], index: 3, kind: input, shape index: {}]
  %s4 = inlined_call_operand.hbm [shape: f32[1,128], index: 4, kind: input, shape index: {}]
  %s5 = inlined_call_operand.hbm [shape: bf16[128,128], index: 5, kind: input, shape index: {}]
  %s6 = inlined_call_operand.hbm [shape: f32[1,128], index: 6, kind: input, shape index: {}]
  %s7 = inlined_call_operand.vmem [shape: bf16[8,128], index: 7, kind: input, shape index: {}]
  %s8 = inlined_call_operand.vmem [shape: f32[8,1], index: 8, kind: input, shape index: {}]
  %s9 = inlined_call_operand.vmem [shape: f32[8,8], index: 9, kind: output, shape index: {}]
  %s10 = sld [smem:[#allocation0]]
  $region66: #{ecg_classifier_forward.1} parent=0
    _
  %s12 = ssub.s32 1, %s10
  %s13 = scalar_select 0, %s12, %s10
  $region1: #{ecg_classifier_forward.1} parent=0
    #allocation2 [shape = 'u8[4096]{0}', space=vmem, size = 0x1000, scoped, tag = 'input window, operand 0, single buffered']
    #allocation3 [shape = 's32[1]{0}', space=sflag, size = 0x4, scoped, tag = 'scoped memory for ecg_classifier_forward.1']
    #allocation4 [shape = 'u8[32768]{0}', space=vmem, size = 0x8000, scoped, tag = 'input window, operand 3, single buffered']
    #allocation5 [shape = 's32[1]{0}', space=sflag, size = 0x4, scoped, tag = 'scoped memory for ecg_classifier_forward.1']
    #allocation6 [shape = 'u8[512]{0}', space=vmem, size = 0x400, scoped, tag = 'input window, operand 4, single buffered']
    #allocation7 [shape = 'u8[32768]{0}', space=vmem, size = 0x8000, scoped, tag = 'input window, operand 5, single buffered']
    #allocation8 [shape = 's32[1]{0}', space=sflag, size = 0x4, scoped, tag = 'scoped memory for ecg_classifier_forward.1']
    #allocation9 [shape = 'u8[512]{0}', space=vmem, size = 0x400, scoped, tag = 'input window, operand 6, single buffered']
    %14 = vsyncpa [#allocation3], 0
    %15 = vsyncpa [#allocation5], 0
    %16 = vsyncpa [#allocation8], 0
    // Predicated region
    $region2: #{ecg_classifier_forward.1} parent=1 // pred_check
      _
    $region3: #{ecg_classifier_forward.1} parent=1 // pred_check_branch
      %18 = sbr.rel (0) target = $region5
    $region4: #{ecg_classifier_forward.1} parent=1 // pred_region
      %s20 = ssub.s32 128, 128
      %21 = vsyncadd [#allocation3], %s20
      %s23 = sshll.u32 [#allocation2], 4
      %s24 = int_to_ptr.vmem [resolvable:$true] %s23
      %26 = dma.hbm_to_vmem [thread:$0]  %s0, 128, %s24, [#allocation3]
    $region5: #{ecg_classifier_forward.1} parent=1 // pred_fallthru
      _
    // Predicated region
    $region6: #{ecg_classifier_forward.1} parent=1 // pred_check
      _
    $region7: #{ecg_classifier_forward.1} parent=1 // pred_check_branch
      %28 = sbr.rel (0) target = $region9
    $region8: #{ecg_classifier_forward.1} parent=1 // pred_region
      _
    $region9: #{ecg_classifier_forward.1} parent=1 // pred_fallthru
      _
    // Predicated region
    $region10: #{ecg_classifier_forward.1} parent=1 // pred_check
      _
    $region11: #{ecg_classifier_forward.1} parent=1 // pred_check_branch
      %30 = sbr.rel (0) target = $region13
    $region12: #{ecg_classifier_forward.1} parent=1 // pred_region
      _
    $region13: #{ecg_classifier_forward.1} parent=1 // pred_fallthru
      _
    // Predicated region
    $region14: #{ecg_classifier_forward.1} parent=1 // pred_check
      _
    $region15: #{ecg_classifier_forward.1} parent=1 // pred_check_branch
      %32 = sbr.rel (0) target = $region17
    $region16: #{ecg_classifier_forward.1} parent=1 // pred_region
      %s34 = ssub.s32 1024, 1024
      %35 = vsyncadd [#allocation5], %s34
      %s36 = sshll.u32 [#allocation4], 4
      %s37 = int_to_ptr.vmem [resolvable:$true] %s36
      %42 = dma.hbm_to_vmem [thread:$0]  %s3, 1024, %s37, [#allocation5], 64, 64, 4
    $region17: #{ecg_classifier_forward.1} parent=1 // pred_fallthru
      _
    // Predicated region
    $region18: #{ecg_classifier_forward.1} parent=1 // pred_check
      _
    $region19: #{ecg_classifier_forward.1} parent=1 // pred_check_branch
      %44 = sbr.rel (0) target = $region21
    $region20: #{ecg_classifier_forward.1} parent=1 // pred_region
      %s46 = ssub.s32 16, 16
      %47 = vsyncadd [#allocation5], %s46
      %s49 = sshll.u32 [#allocation6], 4
      %s50 = int_to_ptr.vmem [resolvable:$true] %s49
      %52 = dma.hbm_to_vmem [thread:$0]  %s4, 16, %s50, [#allocation5]
    $region21: #{ecg_classifier_forward.1} parent=1 // pred_fallthru
      _
    // Predicated region
    $region22: #{ecg_classifier_forward.1} parent=1 // pred_check
      _
    $region23: #{ecg_classifier_forward.1} parent=1 // pred_check_branch
      %54 = sbr.rel (0) target = $region25
    $region24: #{ecg_classifier_forward.1} parent=1 // pred_region
      %s56 = ssub.s32 1024, 1024
      %57 = vsyncadd [#allocation8], %s56
      %s58 = sshll.u32 [#allocation7], 4
      %s59 = int_to_ptr.vmem [resolvable:$true] %s58
      %64 = dma.hbm_to_vmem [thread:$0]  %s5, 1024, %s59, [#allocation8], 64, 64, 4
    $region25: #{ecg_classifier_forward.1} parent=1 // pred_fallthru
      _
    // Predicated region
    $region26: #{ecg_classifier_forward.1} parent=1 // pred_check
      _
    $region27: #{ecg_classifier_forward.1} parent=1 // pred_check_branch
      %66 = sbr.rel (0) target = $region29
    $region28: #{ecg_classifier_forward.1} parent=1 // pred_region
      %s68 = ssub.s32 16, 16
      %69 = vsyncadd [#allocation8], %s68
      %s71 = sshll.u32 [#allocation9], 4
      %s72 = int_to_ptr.vmem [resolvable:$true] %s71
      %74 = dma.hbm_to_vmem [thread:$0]  %s6, 16, %s72, [#allocation8]
    $region29: #{ecg_classifier_forward.1} parent=1 // pred_fallthru
      _
    // Predicated region
    $region30: #{ecg_classifier_forward.1} parent=1 // pred_check
      _
    $region31: #{ecg_classifier_forward.1} parent=1 // pred_check_branch
      %76 = sbr.rel (0) target = $region33
    $region32: #{ecg_classifier_forward.1} parent=1 // pred_region
      _
    $region33: #{ecg_classifier_forward.1} parent=1 // pred_fallthru
      _
    // Predicated region
    $region34: #{ecg_classifier_forward.1} parent=1 // pred_check
      _
    $region35: #{ecg_classifier_forward.1} parent=1 // pred_check_branch
      %78 = sbr.rel (0) target = $region37
    $region36: #{ecg_classifier_forward.1} parent=1 // pred_region
      _
    $region37: #{ecg_classifier_forward.1} parent=1 // pred_fallthru
      _
    // Predicated region
    $region38: #{ecg_classifier_forward.1} parent=1 // pred_check
      _
    $region39: #{ecg_classifier_forward.1} parent=1 // pred_check_branch
      %80 = sbr.rel (0) target = $region41
    $region40: #{ecg_classifier_forward.1} parent=1 // pred_region
      %81 = dma.done [#allocation3], 128
    $region41: #{ecg_classifier_forward.1} parent=1 // pred_fallthru
      _
    // Predicated region
    $region42: #{ecg_classifier_forward.1} parent=1 // pred_check
      _
    $region43: #{ecg_classifier_forward.1} parent=1 // pred_check_branch
      %83 = sbr.rel (0) target = $region45
    $region44: #{ecg_classifier_forward.1} parent=1 // pred_region
      %84 = dma.done [#allocation5], 1024
    $region45: #{ecg_classifier_forward.1} parent=1 // pred_fallthru
      _
    // Predicated region
    $region46: #{ecg_classifier_forward.1} parent=1 // pred_check
      _
    $region47: #{ecg_classifier_forward.1} parent=1 // pred_check_branch
      %86 = sbr.rel (0) target = $region49
    $region48: #{ecg_classifier_forward.1} parent=1 // pred_region
      %87 = dma.done [#allocation5], 16
    $region49: #{ecg_classifier_forward.1} parent=1 // pred_fallthru
      _
    // Predicated region
    $region50: #{ecg_classifier_forward.1} parent=1 // pred_check
      _
    $region51: #{ecg_classifier_forward.1} parent=1 // pred_check_branch
      %89 = sbr.rel (0) target = $region53
    $region52: #{ecg_classifier_forward.1} parent=1 // pred_region
      %90 = dma.done [#allocation8], 1024
    $region53: #{ecg_classifier_forward.1} parent=1 // pred_fallthru
      _
    // Predicated region
    $region54: #{ecg_classifier_forward.1} parent=1 // pred_check
      _
    $region55: #{ecg_classifier_forward.1} parent=1 // pred_check_branch
      %92 = sbr.rel (0) target = $region57
    $region56: #{ecg_classifier_forward.1} parent=1 // pred_region
      %93 = dma.done [#allocation8], 16
    $region57: #{ecg_classifier_forward.1} parent=1 // pred_fallthru
      _
    %v95 = vld [vmem:[#allocation2] sm:$0xff]
    %v96 = vpack.c.bf16 %v95, %v95
    %v97 = vld [vmem:[%s1] sm:$0xf]
    %v98 = vld [vmem:[%s1 + $0x4] sm:$0xf]
    %v99 = vld [vmem:[%s1 + $0x8] sm:$0xf]
    %v100 = vld [vmem:[%s1 + $0xc] sm:$0xf]
    %v101 = vld [vmem:[%s2] sm:$0x1]
    %v103 = vlaneseq
    %v104 = vshrl.u32 %v103, 7
    %v105 = vsub.s32 0, %v104
    %v106 = vrot.slane %v101, %v105
    %v112 = vunpack.c.l.b16 %v97
    %v113 = vunpack.c.l.b16 %v98
    %v114 = vunpack.c.l.b16 %v99
    %v115 = vunpack.c.l.b16 %v100
    %v116 = vpack.c.b16 %v113, %v112
    %v117 = vpack.c.b16 %v115, %v114
    %vm120 = vcmask 261120
    %v122 = vsel %vm120, %v96, 0
    %124 = vmatprep.subr.bf16.mxu0 0
    %125 = vmatpush1.bf16.msra.mxu0 0
    %126 = vmatprep.subr.bf16.mxu0 0
    %127 = vmatpush1.bf16.msra.mxu0 0
    %128 = vmatprep.subr.bf16.mxu0 0
    %129 = vmatpush1.bf16.msra.mxu0 0
    %130 = vmatprep.subr.bf16.mxu0 0
    %131 = vmatpush1.bf16.msra.mxu0 0
    %132 = vmatprep.subr.bf16.mxu0 0
    %133 = vmatpush1.bf16.msra.mxu0 0
    %134 = vmatprep.subr.bf16.mxu0 0
    %135 = vmatpush1.bf16.msra.mxu0 0
    %136 = vmatprep.subr.bf16.mxu0 0
    %137 = vmatpush1.bf16.msra.mxu0 %v117
    %138 = vmatprep.subr.bf16.mxu0 0
    %139 = vmatpush1.bf16.msra.mxu0 %v116
    %140 = vmatprep.subr.bf16.mxu0 0
    %141 = vmatpush2.bf16.msra.mxu0 0
    %142 = vmatprep.subr.bf16.mxu0 0
    %143 = vmatpush2.bf16.msra.mxu0 0
    %144 = vmatprep.subr.bf16.mxu0 0
    %145 = vmatpush2.bf16.msra.mxu0 0
    %146 = vmatprep.subr.bf16.mxu0 0
    %147 = vmatpush2.bf16.msra.mxu0 0
    %148 = vmatprep.subr.bf16.mxu0 0
    %149 = vmatpush2.bf16.msra.mxu0 0
    %150 = vmatprep.subr.bf16.mxu0 0
    %151 = vmatpush2.bf16.msra.mxu0 0
    %152 = vmatprep.subr.bf16.mxu0 0
    %153 = vmatpush2.bf16.msra.mxu0 0
    %154 = vmatprep.subr.bf16.mxu0 0
    %155 = vmatpush2.bf16.msra.mxu0 0
    %156 = vmatprep.mubr.bf16.mxu0 0
    %157 = vmatmul.mubr.bf16.gmra.mxu0 %v122
    %v158 = vpop.f32.mrf.mxu0
    %v159 = vadd.f32 %v106, %v158
    %v160 = vpop.f32.mrf.mxu0
    %v161 = vpop.f32.mrf.mxu0
    %v162 = vpop.f32.mrf.mxu0
    %163 = vdwg.mxu0
    %v164 = vmax.f32 %v159, 0.0
    %v165 = vpack.c.bf16 %v164, %v164
    %v166 = vld [vmem:[#allocation4] sm:$0xf]
    %v167 = vld [vmem:[#allocation4 + $0x4] sm:$0xf]
    %v168 = vld [vmem:[#allocation4 + $0x8] sm:$0xf]
    %v169 = vld [vmem:[#allocation4 + $0xc] sm:$0xf]
    %v170 = vld [vmem:[#allocation4 + $0x10] sm:$0xf]
    %v171 = vld [vmem:[#allocation4 + $0x14] sm:$0xf]
    %v172 = vld [vmem:[#allocation4 + $0x18] sm:$0xf]
    %v173 = vld [vmem:[#allocation4 + $0x1c] sm:$0xf]
    %v174 = vld [vmem:[#allocation4 + $0x20] sm:$0xf]
    %v175 = vld [vmem:[#allocation4 + $0x24] sm:$0xf]
    %v176 = vld [vmem:[#allocation4 + $0x28] sm:$0xf]
    %v177 = vld [vmem:[#allocation4 + $0x2c] sm:$0xf]
    %v178 = vld [vmem:[#allocation4 + $0x30] sm:$0xf]
    %v179 = vld [vmem:[#allocation4 + $0x34] sm:$0xf]
    %v180 = vld [vmem:[#allocation4 + $0x38] sm:$0xf]
    %v181 = vld [vmem:[#allocation4 + $0x3c] sm:$0xf]
    %v182 = vld [vmem:[#allocation6] sm:$0x1]
    %v184 = vlaneseq
    %v185 = vshrl.u32 %v184, 7
    %v186 = vsub.s32 0, %v185
    %v187 = vrot.slane %v182, %v186
    %v205 = vunpack.c.l.b16 %v166
    %v206 = vunpack.c.l.b16 %v167
    %v207 = vunpack.c.l.b16 %v168
    %v208 = vunpack.c.l.b16 %v169
    %v209 = vunpack.c.l.b16 %v170
    %v210 = vunpack.c.l.b16 %v171
    %v211 = vunpack.c.l.b16 %v172
    %v212 = vunpack.c.l.b16 %v173
    %v213 = vunpack.c.l.b16 %v174
    %v214 = vunpack.c.l.b16 %v175
    %v215 = vunpack.c.l.b16 %v176
    %v216 = vunpack.c.l.b16 %v177
    %v217 = vunpack.c.l.b16 %v178
    %v218 = vunpack.c.l.b16 %v179
    %v219 = vunpack.c.l.b16 %v180
    %v220 = vunpack.c.l.b16 %v181
    %v221 = vpack.c.b16 %v206, %v205
    %v222 = vpack.c.b16 %v208, %v207
    %v223 = vpack.c.b16 %v210, %v209
    %v224 = vpack.c.b16 %v212, %v211
    %v225 = vpack.c.b16 %v214, %v213
    %v226 = vpack.c.b16 %v216, %v215
    %v227 = vpack.c.b16 %v218, %v217
    %v228 = vpack.c.b16 %v220, %v219
    %237 = vmatprep.subr.bf16.mxu0 0
    %238 = vmatpush1.bf16.msra.mxu0 %v228
    %239 = vmatprep.subr.bf16.mxu0 0
    %240 = vmatpush1.bf16.msra.mxu0 %v227
    %241 = vmatprep.subr.bf16.mxu0 0
    %242 = vmatpush1.bf16.msra.mxu0 %v226
    %243 = vmatprep.subr.bf16.mxu0 0
    %244 = vmatpush1.bf16.msra.mxu0 %v225
    %245 = vmatprep.subr.bf16.mxu0 0
    %246 = vmatpush1.bf16.msra.mxu0 %v224
    %247 = vmatprep.subr.bf16.mxu0 0
    %248 = vmatpush1.bf16.msra.mxu0 %v223
    %249 = vmatprep.subr.bf16.mxu0 0
    %250 = vmatpush1.bf16.msra.mxu0 %v222
    %251 = vmatprep.subr.bf16.mxu0 0
    %252 = vmatpush1.bf16.msra.mxu0 %v221
    %253 = vmatprep.subr.bf16.mxu0 0
    %254 = vmatpush2.bf16.msra.mxu0 0
    %255 = vmatprep.subr.bf16.mxu0 0
    %256 = vmatpush2.bf16.msra.mxu0 0
    %257 = vmatprep.subr.bf16.mxu0 0
    %258 = vmatpush2.bf16.msra.mxu0 0
    %259 = vmatprep.subr.bf16.mxu0 0
    %260 = vmatpush2.bf16.msra.mxu0 0
    %261 = vmatprep.subr.bf16.mxu0 0
    %262 = vmatpush2.bf16.msra.mxu0 0
    %263 = vmatprep.subr.bf16.mxu0 0
    %264 = vmatpush2.bf16.msra.mxu0 0
    %265 = vmatprep.subr.bf16.mxu0 0
    %266 = vmatpush2.bf16.msra.mxu0 0
    %267 = vmatprep.subr.bf16.mxu0 0
    %268 = vmatpush2.bf16.msra.mxu0 0
    %269 = vmatprep.mubr.bf16.mxu0 0
    %270 = vmatmul.mubr.bf16.gmra.mxu0 %v165
    %v271 = vpop.f32.mrf.mxu0
    %v272 = vadd.f32 %v187, %v271
    %v273 = vpop.f32.mrf.mxu0
    %v274 = vpop.f32.mrf.mxu0
    %v275 = vpop.f32.mrf.mxu0
    %276 = vdwg.mxu0
    %v277 = vmax.f32 %v272, 0.0
    %v278 = vpack.c.bf16 %v277, %v277
    %v279 = vld [vmem:[#allocation7] sm:$0xf]
    %v280 = vld [vmem:[#allocation7 + $0x4] sm:$0xf]
    %v281 = vld [vmem:[#allocation7 + $0x8] sm:$0xf]
    %v282 = vld [vmem:[#allocation7 + $0xc] sm:$0xf]
    %v283 = vld [vmem:[#allocation7 + $0x10] sm:$0xf]
    %v284 = vld [vmem:[#allocation7 + $0x14] sm:$0xf]
    %v285 = vld [vmem:[#allocation7 + $0x18] sm:$0xf]
    %v286 = vld [vmem:[#allocation7 + $0x1c] sm:$0xf]
    %v287 = vld [vmem:[#allocation7 + $0x20] sm:$0xf]
    %v288 = vld [vmem:[#allocation7 + $0x24] sm:$0xf]
    %v289 = vld [vmem:[#allocation7 + $0x28] sm:$0xf]
    %v290 = vld [vmem:[#allocation7 + $0x2c] sm:$0xf]
    %v291 = vld [vmem:[#allocation7 + $0x30] sm:$0xf]
    %v292 = vld [vmem:[#allocation7 + $0x34] sm:$0xf]
    %v293 = vld [vmem:[#allocation7 + $0x38] sm:$0xf]
    %v294 = vld [vmem:[#allocation7 + $0x3c] sm:$0xf]
    %v295 = vld [vmem:[#allocation9] sm:$0x1]
    %v297 = vlaneseq
    %v298 = vshrl.u32 %v297, 7
    %v299 = vsub.s32 0, %v298
    %v300 = vrot.slane %v295, %v299
    %v318 = vunpack.c.l.b16 %v279
    %v319 = vunpack.c.l.b16 %v280
    %v320 = vunpack.c.l.b16 %v281
    %v321 = vunpack.c.l.b16 %v282
    %v322 = vunpack.c.l.b16 %v283
    %v323 = vunpack.c.l.b16 %v284
    %v324 = vunpack.c.l.b16 %v285
    %v325 = vunpack.c.l.b16 %v286
    %v326 = vunpack.c.l.b16 %v287
    %v327 = vunpack.c.l.b16 %v288
    %v328 = vunpack.c.l.b16 %v289
    %v329 = vunpack.c.l.b16 %v290
    %v330 = vunpack.c.l.b16 %v291
    %v331 = vunpack.c.l.b16 %v292
    %v332 = vunpack.c.l.b16 %v293
    %v333 = vunpack.c.l.b16 %v294
    %v334 = vpack.c.b16 %v319, %v318
    %v335 = vpack.c.b16 %v321, %v320
    %v336 = vpack.c.b16 %v323, %v322
    %v337 = vpack.c.b16 %v325, %v324
    %v338 = vpack.c.b16 %v327, %v326
    %v339 = vpack.c.b16 %v329, %v328
    %v340 = vpack.c.b16 %v331, %v330
    %v341 = vpack.c.b16 %v333, %v332
    %350 = vmatprep.subr.bf16.mxu0 0
    %351 = vmatpush1.bf16.msra.mxu0 %v341
    %352 = vmatprep.subr.bf16.mxu0 0
    %353 = vmatpush1.bf16.msra.mxu0 %v340
    %354 = vmatprep.subr.bf16.mxu0 0
    %355 = vmatpush1.bf16.msra.mxu0 %v339
    %356 = vmatprep.subr.bf16.mxu0 0
    %357 = vmatpush1.bf16.msra.mxu0 %v338
    %358 = vmatprep.subr.bf16.mxu0 0
    %359 = vmatpush1.bf16.msra.mxu0 %v337
    %360 = vmatprep.subr.bf16.mxu0 0
    %361 = vmatpush1.bf16.msra.mxu0 %v336
    %362 = vmatprep.subr.bf16.mxu0 0
    %363 = vmatpush1.bf16.msra.mxu0 %v335
    %364 = vmatprep.subr.bf16.mxu0 0
    %365 = vmatpush1.bf16.msra.mxu0 %v334
    %366 = vmatprep.subr.bf16.mxu0 0
    %367 = vmatpush2.bf16.msra.mxu0 0
    %368 = vmatprep.subr.bf16.mxu0 0
    %369 = vmatpush2.bf16.msra.mxu0 0
    %370 = vmatprep.subr.bf16.mxu0 0
    %371 = vmatpush2.bf16.msra.mxu0 0
    %372 = vmatprep.subr.bf16.mxu0 0
    %373 = vmatpush2.bf16.msra.mxu0 0
    %374 = vmatprep.subr.bf16.mxu0 0
    %375 = vmatpush2.bf16.msra.mxu0 0
    %376 = vmatprep.subr.bf16.mxu0 0
    %377 = vmatpush2.bf16.msra.mxu0 0
    %378 = vmatprep.subr.bf16.mxu0 0
    %379 = vmatpush2.bf16.msra.mxu0 0
    %380 = vmatprep.subr.bf16.mxu0 0
    %381 = vmatpush2.bf16.msra.mxu0 0
    %382 = vmatprep.mubr.bf16.mxu0 0
    %383 = vmatmul.mubr.bf16.gmra.mxu0 %v278
    %v384 = vpop.f32.mrf.mxu0
    %v385 = vadd.f32 %v300, %v384
    %v386 = vpop.f32.mrf.mxu0
    %v387 = vpop.f32.mrf.mxu0
    %v388 = vpop.f32.mrf.mxu0
    %389 = vdwg.mxu0
    %v390 = vmax.f32 %v385, 0.0
    %v391 = vld [vmem:[%s7] sm:$0xf]
    %v392 = vpack.c.bf16 %v390, %v390
    %v393 = vld [vmem:[%s8] sm:$0xff]
    %395 = vset.pattern.permute.xlu0 0
    %396 = vperm.xlu0 %395, %v393
    %v397 = vpop.permute.xlu0 %396
    %399 = vmatprep.subr.bf16.mxu0 0
    %400 = vmatpush1.bf16.xpose.msra.mxu0 0
    %401 = vmatprep.subr.bf16.mxu0 0
    %402 = vmatpush1.bf16.xpose.msra.mxu0 0
    %403 = vmatprep.subr.bf16.mxu0 0
    %404 = vmatpush1.bf16.xpose.msra.mxu0 0
    %405 = vmatprep.subr.bf16.mxu0 0
    %406 = vmatpush1.bf16.xpose.msra.mxu0 0
    %407 = vmatprep.subr.bf16.mxu0 0
    %408 = vmatpush1.bf16.xpose.msra.mxu0 0
    %409 = vmatprep.subr.bf16.mxu0 0
    %410 = vmatpush1.bf16.xpose.msra.mxu0 0
    %411 = vmatprep.subr.bf16.mxu0 0
    %412 = vmatpush1.bf16.xpose.msra.mxu0 0
    %413 = vmatprep.subr.bf16.mxu0 0
    %414 = vmatpush1.bf16.xpose.msra.mxu0 %v392
    %415 = vmatprep.subr.bf16.mxu0 0
    %416 = vmatpush2.bf16.xpose.msra.mxu0 0
    %417 = vmatprep.subr.bf16.mxu0 0
    %418 = vmatpush2.bf16.xpose.msra.mxu0 0
    %419 = vmatprep.subr.bf16.mxu0 0
    %420 = vmatpush2.bf16.xpose.msra.mxu0 0
    %421 = vmatprep.subr.bf16.mxu0 0
    %422 = vmatpush2.bf16.xpose.msra.mxu0 0
    %423 = vmatprep.subr.bf16.mxu0 0
    %424 = vmatpush2.bf16.xpose.msra.mxu0 0
    %425 = vmatprep.subr.bf16.mxu0 0
    %426 = vmatpush2.bf16.xpose.msra.mxu0 0
    %427 = vmatprep.subr.bf16.mxu0 0
    %428 = vmatpush2.bf16.xpose.msra.mxu0 0
    %429 = vmatprep.subr.bf16.mxu0 0
    %430 = vmatpush2.bf16.xpose.msra.mxu0 0
    %431 = vmatprep.mubr.bf16.mxu0 0
    %432 = vmatmul.mubr.bf16.gmra.mxu0 %v391
    %v433 = vpop.f32.mrf.mxu0
    %v434 = vadd.f32 %v397, %v433
    %v435 = vpop.f32.mrf.mxu0
    %v436 = vpop.f32.mrf.mxu0
    %v437 = vpop.f32.mrf.mxu0
    %438 = vdwg.mxu0
    %vm439 = vcmask 64512
    %440 = vst.msk [vmem:[%s9] sm:$0xff] %vm439, %v434
    // Predicated region
    $region58: #{ecg_classifier_forward.1} parent=1 // pred_check
      _
    $region59: #{ecg_classifier_forward.1} parent=1 // pred_check_branch
      %442 = sbr.rel (0) target = $region61
    $region60: #{ecg_classifier_forward.1} parent=1 // pred_region
      _
    $region61: #{ecg_classifier_forward.1} parent=1 // pred_fallthru
      _
    // Predicated region
    $region62: #{ecg_classifier_forward.1} parent=1 // pred_check
      _
    $region63: #{ecg_classifier_forward.1} parent=1 // pred_check_branch
      %444 = sbr.rel (0) target = $region65
    $region64: #{ecg_classifier_forward.1} parent=1 // pred_region
      _
    $region65: #{ecg_classifier_forward.1} parent=1 // pred_fallthru
      _
    %445 = vsyncpa [#allocation3], 1
    %446 = vsyncpa [#allocation5], 1
    %447 = vsyncpa [#allocation8], 1

</llo_original>
